<compile_context>
chip_gen: v7x
topology: tpu7x:2x2x1
jax: 0.10.0
libtpu: 0.0.40
codegen_flags: <defaults>
</compile_context>

<pallas_src>
import math

import jax
import jax.numpy as jnp
from jax.experimental import pallas as pl
from jax.experimental.pallas import tpu as pltpu

HIDDEN = 100       # fc1 output features in the PyTorch module
HIDDEN_PAD = 128   # padded to a full 128-lane tile for the MXU
OUT = 1            # fc2 output features


def ffn_kernel(x_ref, w1_ref, b1_ref, w2_ref, b2_ref, o_ref):
    # fc1 on the MXU: (tb, D) @ (D, 128), bf16 operands, f32 accumulation.
    x = x_ref[...]
    h = jnp.dot(x.astype(jnp.bfloat16), w1_ref[...],
                preferred_element_type=jnp.float32) + b1_ref[...]
    # TODO(synk): PyTorch nn.GELU() defaults to exact-erf GELU; tanh-approx is used here
    # (max abs diff ~3e-3) because tanh has a guaranteed Mosaic/EUP lowering.
    h = jax.nn.gelu(h, approximate=True)
    # activation dropout is identity at inference (nn.Dropout in eval mode).
    # fc2 as broadcast-multiply + lane reduce (VPU + XLU), f32 throughout:
    # (tb, 128) * (1, 128) -> sum over lanes -> (tb, 1).  Padded hidden columns are
    # exactly zero (zero w1 cols/b1 entries -> gelu(0)=0, zero w2 entries), so only the
    # real logit is ever produced; sigmoid runs on tb values, not tb*128.
    y = jnp.sum(h * w2_ref[...], axis=-1, keepdims=True) + b2_ref[...]
    o_ref[...] = jax.nn.sigmoid(y)        # (tb, 1) store: 4 B/row instead of 512 B/row


def _round_up(n, m):
    return ((n + m - 1) // m) * m


def _vmem_limit_bytes():
    """Generation-aware scoped-VMEM limit: ~96 MiB on 128 MiB parts (v5e/v6e),
    ~48 MiB on 64 MiB-per-TC parts (v7x)."""
    try:
        cap = pltpu.get_tpu_info().vmem_capacity_bytes
    except Exception:
        cap = 64 << 20                      # conservative fallback (v7x per-TC)
    return min(cap * 3 // 4, 100 << 20)


def _pick_batch_tile(B, D, vmem_limit):
    """Large batch tiles to amortize the ~0.35 us per-grid-step overhead, bounded by
    the VMEM budget, and capped so there are >=2 grid steps whenever B allows it
    (v7x megacore shards 'parallel' grid steps across its two TensorCores)."""
    # Per-row VMEM bytes: double-buffered f32 x tile + ~3 block-width f32 intermediates
    # (h, gelu(h), h*w2) + output row.
    per_row = 2 * D * 4 + 3 * HIDDEN_PAD * 4 + 2 * 4
    budget = vmem_limit // 2                 # headroom for compiler scratch / weights
    tb = min(4096, max(8, (budget // per_row) // 8 * 8))
    tb = min(tb, max(8, _round_up(pl.cdiv(B, 2), 8)))
    return tb


def feed_forward_network(x, params, *, batch_tile=None):
    """x: (..., embedding_dim) f32 or bf16 (bf16 is used directly — no wrapper astype);
    params from pack_params(). Returns (..., 1) f32."""
    orig_shape = x.shape
    D = orig_shape[-1]
    x2 = x.reshape(-1, D)
    B = x2.shape[0]

    w1, b1, w2, b2 = params["w1"], params["b1"], params["w2"], params["b2"]

    vmem_limit = _vmem_limit_bytes()
    tb = batch_tile if batch_tile is not None else _pick_batch_tile(B, D, vmem_limit)
    tb = max(8, _round_up(tb, 8))

    B_pad = _round_up(B, tb)
    if B_pad != B:
        # zero-pad only the ragged tail tile (< tb wasted rows)
        x2 = jnp.pad(x2, ((0, B_pad - B), (0, 0)))
    grid = (B_pad // tb,)

    # Grid-invariant (resident) weight/bias blocks (<100 KB total).
    resident = lambda arr: pl.BlockSpec(arr.shape, lambda i: (0, 0))

    out = pl.pallas_call(
        ffn_kernel,
        out_shape=jax.ShapeDtypeStruct((B_pad, OUT), jnp.float32),
        grid_spec=pltpu.PrefetchScalarGridSpec(
            num_scalar_prefetch=0,
            grid=grid,
            in_specs=[
                pl.BlockSpec((tb, D), lambda i: (i, 0)),   # x batch tile
                resident(w1), resident(b1),
                resident(w2), resident(b2),
            ],
            out_specs=pl.BlockSpec((tb, OUT), lambda i: (i, 0)),
        ),
        compiler_params=pltpu.CompilerParams(
            dimension_semantics=("parallel",),   # megacore-shards batch tiles on v7x
            vmem_limit_bytes=vmem_limit,         # generation-aware (queried above)
        ),
    )(x2, w1, b1, w2, b2)

    out = out[:B]                                # drop ragged-tile padding rows
    return out.reshape(*orig_shape[:-1], OUT)


def init_raw_params(key, embedding_dim):
    """nn.Linear-style init in PyTorch layout: weight (out, in), bias (out,)."""
    k = jax.random.split(key, 4)

    def linear(kw, kb, fan_in, fan_out):
        bound = 1.0 / math.sqrt(fan_in)
        w = jax.random.uniform(kw, (fan_out, fan_in), minval=-bound, maxval=bound,
                               dtype=jnp.float32)
        b = jax.random.uniform(kb, (fan_out,), minval=-bound, maxval=bound,
                               dtype=jnp.float32)
        return w, b

    w1, b1 = linear(k[0], k[1], embedding_dim, HIDDEN)
    w2, b2 = linear(k[2], k[3], HIDDEN, OUT)
    # fc3 exists in the module but is never used by forward(); omitted.
    return {"w1": w1, "b1": b1, "w2": w2, "b2": b2}


def pack_params(raw):
    """fc1: transpose to (in, out), zero-pad hidden to 128 lanes, cast to bf16 for the MXU.
    fc2: keep as a single f32 (1, 128) weight row + (1, 1) bias (lane-reduce path)."""
    D = raw["w1"].shape[1]
    w1 = jnp.zeros((D, HIDDEN_PAD), jnp.float32).at[:, :HIDDEN].set(raw["w1"].T)
    b1 = jnp.zeros((1, HIDDEN_PAD), jnp.float32).at[:, :HIDDEN].set(raw["b1"])
    w2 = jnp.zeros((1, HIDDEN_PAD), jnp.float32).at[:, :HIDDEN].set(raw["w2"][0])
    b2 = raw["b2"].reshape(1, 1).astype(jnp.float32)
    return {"w1": w1.astype(jnp.bfloat16), "b1": b1, "w2": w2, "b2": b2}


def reference_forward(x, raw):
    h = x @ raw["w1"].T + raw["b1"]
    h = jax.nn.gelu(h, approximate=True)
    y = h @ raw["w2"].T + raw["b2"]
    return jax.nn.sigmoid(y)


if __name__ == "__main__":
    key = jax.random.PRNGKey(0)
    k_param, k_x = jax.random.split(key)

    batch = 16
    embedding_dim = 32

    raw = init_raw_params(k_param, embedding_dim)
    params = pack_params(raw)
    x = jax.random.normal(k_x, (batch, embedding_dim), dtype=jnp.float32)

    # Default tile picker gives tb=8 here -> grid=(2,): pipelined + megacore-splittable.
    out = feed_forward_network(x, params)
    out = jax.block_until_ready(out)

    ref = jax.block_until_ready(reference_forward(x, raw))
    assert out.shape == (batch, 1)
    assert jnp.allclose(out, ref, atol=1e-2, rtol=1e-2), "mismatch vs pure-JAX reference"

    print("KERNEL_OK")
</pallas_src>

<mosaic_0001>
module attributes {stable_mosaic.version = 11 : i64} {
  func.func @ffn_kernel(%arg0: i32, %arg1: memref<8x32xf32, #tpu.memory_space<vmem>>, %arg2: memref<32x128xbf16, #tpu.memory_space<vmem>>, %arg3: memref<1x128xf32, #tpu.memory_space<vmem>>, %arg4: memref<1x128xf32, #tpu.memory_space<vmem>>, %arg5: memref<1x1xf32, #tpu.memory_space<vmem>>, %arg6: memref<8x1xf32, #tpu.memory_space<vmem>>) attributes {dimension_semantics = [#tpu.dimension_semantics<parallel>], iteration_bounds = array<i64: 2>, scalar_prefetch = 0 : i64, scratch_operands = 0 : i64, tpu.core_type = #tpu.core_type<tc>, window_params = [{transform_indices = @transform_0, window_bounds = array<i64: 8, 32>}, {pipeline_mode = #tpu.pipeline_mode<synchronous>, transform_indices = @transform_1, window_bounds = array<i64: 32, 128>}, {pipeline_mode = #tpu.pipeline_mode<synchronous>, transform_indices = @transform_2, window_bounds = array<i64: 1, 128>}, {pipeline_mode = #tpu.pipeline_mode<synchronous>, transform_indices = @transform_3, window_bounds = array<i64: 1, 128>}, {pipeline_mode = #tpu.pipeline_mode<synchronous>, transform_indices = @transform_4, window_bounds = array<i64: 1, 1>}, {transform_indices = @transform_5, window_bounds = array<i64: 8, 1>}]} {
    %c0 = arith.constant 0 : index
    %c0_0 = arith.constant 0 : index
    %0 = vector.load %arg1[%c0, %c0_0] : memref<8x32xf32, #tpu.memory_space<vmem>>, vector<8x32xf32>
    %1 = arith.truncf %0 : vector<8x32xf32> to vector<8x32xbf16>
    %c0_1 = arith.constant 0 : index
    %c0_2 = arith.constant 0 : index
    %2 = vector.load %arg2[%c0_1, %c0_2] : memref<32x128xbf16, #tpu.memory_space<vmem>>, vector<32x128xbf16>
    %cst = arith.constant dense<0.000000e+00> : vector<8x128xf32>
    %3 = tpu.matmul %1, %2, %cst {dimension_numbers = #tpu.dot_dimension_numbers<[1], [0], [0], [1], [0, 0, 1, 1], [], []>} : vector<8x32xbf16>, vector<32x128xbf16>, vector<8x128xf32> -> vector<8x128xf32>
    %c0_3 = arith.constant 0 : index
    %c0_4 = arith.constant 0 : index
    %4 = vector.load %arg3[%c0_3, %c0_4] : memref<1x128xf32, #tpu.memory_space<vmem>>, vector<1x128xf32>
    %5 = vector.broadcast %4 : vector<1x128xf32> to vector<8x128xf32>
    %6 = arith.addf %3, %5 : vector<8x128xf32>
    %7 = arith.mulf %6, %6 : vector<8x128xf32>
    %8 = arith.mulf %6, %7 : vector<8x128xf32>
    %cst_5 = arith.constant 4.471500e-02 : f32
    %9 = vector.broadcast %cst_5 : f32 to vector<8x128xf32>
    %10 = arith.mulf %9, %8 : vector<8x128xf32>
    %11 = arith.addf %6, %10 : vector<8x128xf32>
    %cst_6 = arith.constant 0.797884583 : f32
    %12 = vector.broadcast %cst_6 : f32 to vector<8x128xf32>
    %13 = arith.mulf %12, %11 : vector<8x128xf32>
    %14 = math.tanh %13 : vector<8x128xf32>
    %cst_7 = arith.constant 1.000000e+00 : f32
    %15 = vector.broadcast %cst_7 : f32 to vector<8x128xf32>
    %16 = arith.addf %15, %14 : vector<8x128xf32>
    %cst_8 = arith.constant 5.000000e-01 : f32
    %17 = vector.broadcast %cst_8 : f32 to vector<8x128xf32>
    %18 = arith.mulf %17, %16 : vector<8x128xf32>
    %19 = arith.mulf %6, %18 : vector<8x128xf32>
    %c0_9 = arith.constant 0 : index
    %c0_10 = arith.constant 0 : index
    %20 = vector.load %arg4[%c0_9, %c0_10] : memref<1x128xf32, #tpu.memory_space<vmem>>, vector<1x128xf32>
    %21 = vector.broadcast %20 : vector<1x128xf32> to vector<8x128xf32>
    %22 = arith.mulf %19, %21 : vector<8x128xf32>
    %cst_11 = arith.constant dense<0.000000e+00> : vector<8xf32>
    %23 = vector.multi_reduction <add>, %22, %cst_11 [1] : vector<8x128xf32> to vector<8xf32>
    %24 = vector.shape_cast %23 : vector<8xf32> to vector<8x1xf32>
    %c0_12 = arith.constant 0 : index
    %c0_13 = arith.constant 0 : index
    %25 = vector.load %arg5[%c0_12, %c0_13] : memref<1x1xf32, #tpu.memory_space<vmem>>, vector<1x1xf32>
    %26 = vector.broadcast %25 : vector<1x1xf32> to vector<8x1xf32>
    %27 = arith.addf %24, %26 : vector<8x1xf32>
    %28 = arith.negf %27 : vector<8x1xf32>
    %29 = math.exp %28 : vector<8x1xf32>
    %cst_14 = arith.constant 1.000000e+00 : f32
    %30 = vector.broadcast %cst_14 : f32 to vector<8x1xf32>
    %31 = arith.addf %30, %29 : vector<8x1xf32>
    %32 = arith.divf %30, %31 : vector<8x1xf32>
    %c0_15 = arith.constant 0 : index
    %c0_16 = arith.constant 0 : index
    %33 = vector.load %arg6[%c0_15, %c0_16] : memref<8x1xf32, #tpu.memory_space<vmem>>, vector<8x1xf32>
    tpu.vector_store %arg6[%c0_15, %c0_16], %32 {strides = array<i32>} : memref<8x1xf32, #tpu.memory_space<vmem>>, vector<8x1xf32>,
    return
  }
  func.func @transform_0(%arg0: i32) -> (i32, i32) {
    %c0_i32 = arith.constant 0 : i32
    %c0_i32_0 = arith.constant 0 : i32
    return %arg0, %c0_i32 : i32, i32
  }
  func.func @transform_1(%arg0: i32) -> (i32, i32) {
    %c0_i32 = arith.constant 0 : i32
    %c0_i32_0 = arith.constant 0 : i32
    %c0_i32_1 = arith.constant 0 : i32
    return %c0_i32, %c0_i32_0 : i32, i32
  }
  func.func @transform_2(%arg0: i32) -> (i32, i32) {
    %c0_i32 = arith.constant 0 : i32
    %c0_i32_0 = arith.constant 0 : i32
    %c0_i32_1 = arith.constant 0 : i32
    return %c0_i32, %c0_i32_0 : i32, i32
  }
  func.func @transform_3(%arg0: i32) -> (i32, i32) {
    %c0_i32 = arith.constant 0 : i32
    %c0_i32_0 = arith.constant 0 : i32
    %c0_i32_1 = arith.constant 0 : i32
    return %c0_i32, %c0_i32_0 : i32, i32
  }
  func.func @transform_4(%arg0: i32) -> (i32, i32) {
    %c0_i32 = arith.constant 0 : i32
    %c0_i32_0 = arith.constant 0 : i32
    %c0_i32_1 = arith.constant 0 : i32
    return %c0_i32, %c0_i32_0 : i32, i32
  }
  func.func @transform_5(%arg0: i32) -> (i32, i32) {
    %c0_i32 = arith.constant 0 : i32
    %c0_i32_0 = arith.constant 0 : i32
    return %arg0, %c0_i32 : i32, i32
  }
}

</mosaic_0001>

<llo_original>
// kernel: tpu_custom_call.1
$region0: #{tpu_custom_call.1}
  #allocation0 [shape = 'u32[]', space=smem, size = 0x4, offset = 0x4, fixed_abs, tag = 'smem constant byte address 0x4 - core index']
  #allocation1 [shape = 'u32[144,128]{1,0:T(1,128)}', space=vmem, size = 0x12000, scoped, tag = 'internal scratch']
  #allocation2 [shape = 'f32[1,1]{1,0:T(1,128)S(1)}', space=vmem, size = 0x200, scoped, tag = 'scoped memory for tpu_custom_call.1']
  %s0 = inlined_call_operand.hbm [shape: f32[16,32], index: 0, kind: input, shape index: {}]
  %s1 = inlined_call_operand.hbm [shape: bf16[32,128], index: 1, kind: input, shape index: {}]
  %s2 = inlined_call_operand.vmem [shape: f32[1,128], index: 2, kind: input, shape index: {}]
  %s3 = inlined_call_operand.vmem [shape: f32[1,128], index: 3, kind: input, shape index: {}]
  %s4 = inlined_call_operand.<no memory space> [shape: f32[1,1], index: 4, kind: input, shape index: {}]
  %s5 = inlined_call_operand.vmem [shape: f32[16,1], index: 5, kind: output, shape index: {}]
  %s6 = sld [smem:[#allocation0]]
  $region61: #{tpu_custom_call.1} parent=0
    _
  %s8 = ssub.s32 1, %s6
  %s9 = scalar_select 0, %s8, %s6
  %v10 = vstv %s4
  %11 = vst [vmem:[#allocation2] sm:$0x1] %v10
  $region1: #{tpu_custom_call.1} parent=0
    #allocation3 [shape = 'u8[8192]{0}', space=vmem, size = 0x2000, scoped, tag = 'input window, operand 0']
    #allocation4 [shape = 's32[2]{0}', space=sflag, size = 0x8, scoped, tag = 'scoped memory for tpu_custom_call.1']
    #allocation5 [shape = 'u8[8192]{0}', space=vmem, size = 0x2000, scoped, tag = 'input window, operand 1, single buffered']
    #allocation6 [shape = 's32[1]{0}', space=sflag, size = 0x4, scoped, tag = 'scoped memory for tpu_custom_call.1']
    %12 = vsyncpa [#allocation4], 0
    %s13 = scalar_lea.sflag [#allocation4], 1
    %14 = vsyncpa %s13, 0
    %15 = vsyncpa [#allocation6], 0
    loop: start=0, step=1, limit=4
    $region2: #{tpu_custom_call.1} parent=1 // loop_pre_header
      _
    $region3: #{tpu_custom_call.1} parent=1 // loop_header
      %s17 = sphi 0, %s21
      %p18 = scmp.ge.s32.totalorder %s17, 4
      %s27 = sphi 0, %s29
      %s30 = sphi 0, %s27
      %s31 = sphi 0, %s30
      %s47 = sphi 0, %s31
      %s51 = sphi 0, %s51
      %s53 = sphi 0, %s51
      %s54 = sphi 0, %s53
      %s68 = sphi 0, %s54
      %s72 = sphi 0, %s72
      %s74 = sphi 0, %s72
      %s75 = sphi 0, %s74
      %s89 = sphi 0, %s75
      %s93 = sphi 0, %s93
      %s95 = sphi 0, %s93
      %s96 = sphi 0, %s95
      %s110 = sphi 0, %s96
      %s114 = sphi 0, %s114
      %s116 = sphi 0, %s114
      %s117 = sphi 0, %s116
      %s131 = sphi 0, %s117
      %s137 = sphi 0, %s139
      %s140 = sphi 0, %s137
      %s141 = sphi 0, %s140
      %s157 = sphi 0, %s141
    $region4: #{tpu_custom_call.1} parent=1 // loop_header_branch
      %20 = sbr.rel (%p18) target = $region8
    $region5: #{tpu_custom_call.1} parent=1 // loop_body
      %s22 = ssub.s32 %s17, 1
      %s23 = ssub.s32 %s17, 2
      %s24 = sadd.s32 %s17, 1
      %s25 = ssub.s32 %s17, %s24
      %p26 = scmp.eq.s32.totalorder %s25, 0
      %s28 = sadd.s32 %s27, 1
      %s29 = scalar_select %p26, %s27, %s28
      %p32 = pneg %p26
      %p33 = scmp.eq.s32.totalorder %s17, 1
      %p34 = por %p32, %p33
      %p35 = scmp.ne.s32.totalorder %s27, %s30
      %p36 = scmp.eq.s32.totalorder %s17, 0
      %p37 = por %p35, %p36
      %p38 = scmp.ne.s32.totalorder %s27, %s30
      %p39 = scmp.eq.s32.totalorder %s22, 1
      %p40 = por %p38, %p39
      %p41 = scmp.ne.s32.totalorder %s30, %s31
      %p42 = scmp.eq.s32.totalorder %s22, 0
      %p43 = por %p41, %p42
      %p44 = scmp.ne.s32.totalorder %s30, %s31
      %p45 = scmp.eq.s32.totalorder %s23, 1
      %p46 = por %p44, %p45
      %p48 = scmp.ne.s32.totalorder %s31, %s47
      %p49 = scmp.eq.s32.totalorder %s23, 0
      %p50 = por %p48, %p49
      %s52 = sadd.s32 %s51, 1
      %p55 = scmp.eq.s32.totalorder %s17, 1
      %p56 = scmp.ne.s32.totalorder %s51, %s53
      %p57 = scmp.eq.s32.totalorder %s17, 0
      %p58 = por %p56, %p57
      %p59 = scmp.ne.s32.totalorder %s51, %s53
      %p60 = scmp.eq.s32.totalorder %s22, 1
      %p61 = por %p59, %p60
      %p62 = scmp.ne.s32.totalorder %s53, %s54
      %p63 = scmp.eq.s32.totalorder %s22, 0
      %p64 = por %p62, %p63
      %p65 = scmp.ne.s32.totalorder %s53, %s54
      %p66 = scmp.eq.s32.totalorder %s23, 1
      %p67 = por %p65, %p66
      %p69 = scmp.ne.s32.totalorder %s54, %s68
      %p70 = scmp.eq.s32.totalorder %s23, 0
      %p71 = por %p69, %p70
      %s73 = sadd.s32 %s72, 1
      %p76 = scmp.eq.s32.totalorder %s17, 1
      %p77 = scmp.ne.s32.totalorder %s72, %s74
      %p78 = scmp.eq.s32.totalorder %s17, 0
      %p79 = por %p77, %p78
      %p80 = scmp.ne.s32.totalorder %s72, %s74
      %p81 = scmp.eq.s32.totalorder %s22, 1
      %p82 = por %p80, %p81
      %p83 = scmp.ne.s32.totalorder %s74, %s75
      %p84 = scmp.eq.s32.totalorder %s22, 0
      %p85 = por %p83, %p84
      %p86 = scmp.ne.s32.totalorder %s74, %s75
      %p87 = scmp.eq.s32.totalorder %s23, 1
      %p88 = por %p86, %p87
      %p90 = scmp.ne.s32.totalorder %s75, %s89
      %p91 = scmp.eq.s32.totalorder %s23, 0
      %p92 = por %p90, %p91
      %s94 = sadd.s32 %s93, 1
      %p97 = scmp.eq.s32.totalorder %s17, 1
      %p98 = scmp.ne.s32.totalorder %s93, %s95
      %p99 = scmp.eq.s32.totalorder %s17, 0
      %p100 = por %p98, %p99
      %p101 = scmp.ne.s32.totalorder %s93, %s95
      %p102 = scmp.eq.s32.totalorder %s22, 1
      %p103 = por %p101, %p102
      %p104 = scmp.ne.s32.totalorder %s95, %s96
      %p105 = scmp.eq.s32.totalorder %s22, 0
      %p106 = por %p104, %p105
      %p107 = scmp.ne.s32.totalorder %s95, %s96
      %p108 = scmp.eq.s32.totalorder %s23, 1
      %p109 = por %p107, %p108
      %p111 = scmp.ne.s32.totalorder %s96, %s110
      %p112 = scmp.eq.s32.totalorder %s23, 0
      %p113 = por %p111, %p112
      %s115 = sadd.s32 %s114, 1
      %p118 = scmp.eq.s32.totalorder %s17, 1
      %p119 = scmp.ne.s32.totalorder %s114, %s116
      %p120 = scmp.eq.s32.totalorder %s17, 0
      %p121 = por %p119, %p120
      %p122 = scmp.ne.s32.totalorder %s114, %s116
      %p123 = scmp.eq.s32.totalorder %s22, 1
      %p124 = por %p122, %p123
      %p125 = scmp.ne.s32.totalorder %s116, %s117
      %p126 = scmp.eq.s32.totalorder %s22, 0
      %p127 = por %p125, %p126
      %p128 = scmp.ne.s32.totalorder %s116, %s117
      %p129 = scmp.eq.s32.totalorder %s23, 1
      %p130 = por %p128, %p129
      %p132 = scmp.ne.s32.totalorder %s117, %s131
      %p133 = scmp.eq.s32.totalorder %s23, 0
      %p134 = por %p132, %p133
      %s135 = ssub.s32 %s17, %s24
      %p136 = scmp.eq.s32.totalorder %s135, 0
      %s138 = sadd.s32 %s137, 1
      %s139 = scalar_select %p136, %s137, %s138
      %p142 = pneg %p136
      %p143 = scmp.eq.s32.totalorder %s17, 1
      %p144 = por %p142, %p143
      %p145 = scmp.ne.s32.totalorder %s137, %s140
      %p146 = scmp.eq.s32.totalorder %s17, 0
      %p147 = por %p145, %p146
      %p148 = scmp.ne.s32.totalorder %s137, %s140
      %p149 = scmp.eq.s32.totalorder %s22, 1
      %p150 = por %p148, %p149
      %p151 = scmp.ne.s32.totalorder %s140, %s141
      %p152 = scmp.eq.s32.totalorder %s22, 0
      %p153 = por %p151, %p152
      %p154 = scmp.ne.s32.totalorder %s140, %s141
      %p155 = scmp.eq.s32.totalorder %s23, 1
      %p156 = por %p154, %p155
      %p158 = scmp.ne.s32.totalorder %s141, %s157
      %p159 = scmp.eq.s32.totalorder %s23, 0
      %p160 = por %p158, %p159
      %p161 = scmp.le.s32.totalorder 1, %s17
      %p162 = scmp.lt.s32.totalorder %s17, 3
      %p163 = pnand %p161, %p162
      %p164 = pneg %p163
      // Predicated region
      $region9: #{tpu_custom_call.1} parent=5 // pred_check
        _
      $region10: #{tpu_custom_call.1} parent=5 // pred_check_branch
        %166 = sbr.rel (%p163) target = $region12
      $region11: #{tpu_custom_call.1} parent=5 // pred_region
        %s167 = ssub.s32 %s17, 1
        // Predicated region
        $region13: #{tpu_custom_call.1} parent=11 // pred_check
          %p168 = pneg %p64
        $region14: #{tpu_custom_call.1} parent=11 // pred_check_branch
          %170 = sbr.rel (%p168) target = $region16
        $region15: #{tpu_custom_call.1} parent=11 // pred_region
          %s172 = ssub.s32 256, 256
          %173 = vsyncadd [#allocation6], %s172
          %s174 = sshll.u32 [#allocation5], 4
          %s175 = int_to_ptr.vmem [resolvable:$true] %s174
          %180 = dma.hbm_to_vmem [thread:$0]  %s1, 256, %s175, [#allocation6], 64, 64, 4
        $region16: #{tpu_custom_call.1} parent=11 // pred_fallthru
          _
        // Predicated region
        $region17: #{tpu_custom_call.1} parent=11 // pred_check
          %p181 = pneg %p85
        $region18: #{tpu_custom_call.1} parent=11 // pred_check_branch
          %183 = sbr.rel (%p181) target = $region20
        $region19: #{tpu_custom_call.1} parent=11 // pred_region
          _
        $region20: #{tpu_custom_call.1} parent=11 // pred_fallthru
          _
        // Predicated region
        $region21: #{tpu_custom_call.1} parent=11 // pred_check
          %p184 = pneg %p106
        $region22: #{tpu_custom_call.1} parent=11 // pred_check_branch
          %186 = sbr.rel (%p184) target = $region24
        $region23: #{tpu_custom_call.1} parent=11 // pred_region
          _
        $region24: #{tpu_custom_call.1} parent=11 // pred_fallthru
          _
        // Predicated region
        $region25: #{tpu_custom_call.1} parent=11 // pred_check
          %p187 = pneg %p127
        $region26: #{tpu_custom_call.1} parent=11 // pred_check_branch
          %189 = sbr.rel (%p187) target = $region28
        $region27: #{tpu_custom_call.1} parent=11 // pred_region
          _
        $region28: #{tpu_custom_call.1} parent=11 // pred_fallthru
          _
      $region12: #{tpu_custom_call.1} parent=5 // pred_fallthru
        _
      %p190 = scmp.lt.s32.totalorder %s17, 2
      // Predicated region
      $region29: #{tpu_custom_call.1} parent=5 // pred_check
        %p191 = pneg %p190
      $region30: #{tpu_custom_call.1} parent=5 // pred_check_branch
        %193 = sbr.rel (%p191) target = $region32
      $region31: #{tpu_custom_call.1} parent=5 // pred_region
        // Predicated region
        $region33: #{tpu_custom_call.1} parent=31 // pred_check
          %p194 = pneg %p37
        $region34: #{tpu_custom_call.1} parent=31 // pred_check_branch
          %196 = sbr.rel (%p194) target = $region36
        $region35: #{tpu_custom_call.1} parent=31 // pred_region
          %s197 = sand.u32 %s27, 1
          %s198 = scalar_lea.sflag [#allocation4], %s197
          %s199 = sand.u32 %s27, 1
          %s200 = smul.addr %s199, 8
          %s201 = scalar_lea.vmem [#allocation3], %s200
          %s203 = ssub.s32 128, 128
          %204 = vsyncadd %s198, %s203
          %s205 = smul.addr %s17, 128
          %s206 = scalar_lea.hbm %s0, %s205
          %s208 = sshll.u32 %s201, 4
          %s209 = int_to_ptr.vmem [resolvable:$true] %s208
          %211 = dma.hbm_to_vmem [thread:$0]  %s206, 128, %s209, %s198
        $region36: #{tpu_custom_call.1} parent=31 // pred_fallthru
          _
      $region32: #{tpu_custom_call.1} parent=5 // pred_fallthru
        _
      %p212 = scmp.le.s32.totalorder 1, %s17
      %p213 = scmp.lt.s32.totalorder %s17, 3
      %p214 = pnand %p212, %p213
      %p215 = pneg %p214
      // Predicated region
      $region37: #{tpu_custom_call.1} parent=5 // pred_check
        _
      $region38: #{tpu_custom_call.1} parent=5 // pred_check_branch
        %217 = sbr.rel (%p214) target = $region40
      $region39: #{tpu_custom_call.1} parent=5 // pred_region
        %s218 = ssub.s32 %s17, 1
        %s219 = sand.u32 %s30, 1
        %s220 = scalar_lea.sflag [#allocation4], %s219
        %s221 = sand.u32 %s30, 1
        %s222 = smul.addr %s221, 8
        %s223 = scalar_lea.vmem [#allocation3], %s222
        // Predicated region
        $region41: #{tpu_custom_call.1} parent=39 // pred_check
          %p224 = pneg %p43
        $region42: #{tpu_custom_call.1} parent=39 // pred_check_branch
          %226 = sbr.rel (%p224) target = $region44
        $region43: #{tpu_custom_call.1} parent=39 // pred_region
          %227 = dma.done %s220, 128
        $region44: #{tpu_custom_call.1} parent=39 // pred_fallthru
          _
        // Predicated region
        $region45: #{tpu_custom_call.1} parent=39 // pred_check
          %p228 = pneg %p64
        $region46: #{tpu_custom_call.1} parent=39 // pred_check_branch
          %230 = sbr.rel (%p228) target = $region48
        $region47: #{tpu_custom_call.1} parent=39 // pred_region
          %231 = dma.done [#allocation6], 256
        $region48: #{tpu_custom_call.1} parent=39 // pred_fallthru
          _
        %s232 = sand.u32 %s30, 1
        %s233 = scalar_lea.sflag [#allocation4], %s232
        %s234 = sand.u32 %s30, 1
        %s235 = smul.addr %s234, 8
        %s236 = scalar_lea.vmem [#allocation3], %s235
        %p237 = pneg %p43
        %p238 = pneg %p40
        %p239 = pneg %p64
        %p240 = pneg %p61
        %p241 = pneg %p85
        %p242 = pneg %p82
        %p243 = pneg %p106
        %p244 = pneg %p103
        %p245 = pneg %p127
        %p246 = pneg %p124
        %p247 = pneg %p153
        %p248 = pneg %p150
        %p249 = scmp.lt.s32.totalorder %s22, 1
        %s250 = scalar_select %p249, %s22, 1
        %s251 = smul.addr %s250, 8
        %s252 = scalar_lea.vmem %s5, %s251
        %p253 = scmp.lt.s32.totalorder %s22, 1
        %s254 = scalar_select %p253, %s22, 1
        %s255 = smul.addr %s254, 8
        %s256 = scalar_lea.vmem %s5, %s255
        %v258 = vld [vmem:[%s223] sm:$0xff]
        %v259 = vpack.c.bf16 %v258, %v258
        %v260 = vld [vmem:[#allocation5] sm:$0xf]
        %v261 = vld [vmem:[#allocation5 + $0x4] sm:$0xf]
        %v262 = vld [vmem:[#allocation5 + $0x8] sm:$0xf]
        %v263 = vld [vmem:[#allocation5 + $0xc] sm:$0xf]
        %v264 = vld [vmem:[%s2] sm:$0x1]
        %v266 = vlaneseq
        %v267 = vshrl.u32 %v266, 7
        %v268 = vsub.s32 0, %v267
        %v269 = vrot.slane %v264, %v268
        %v275 = vunpack.c.l.b16 %v260
        %v276 = vunpack.c.l.b16 %v261
        %v277 = vunpack.c.l.b16 %v262
        %v278 = vunpack.c.l.b16 %v263
        %v279 = vpack.c.b16 %v276, %v275
        %v280 = vpack.c.b16 %v278, %v277
        %vm283 = vcmask 261120
        %v285 = vsel %vm283, %v259, 0
        %287 = vmatprep.subr.bf16.mxu0 0
        %288 = vmatpush1.bf16.msra.mxu0 %v279
        %289 = vmatprep.subr.bf16.mxu0 0
        %290 = vmatpush1.bf16.msra.mxu0 %v280
        %291 = vmatprep.subr.bf16.mxu0 0
        %292 = vmatpush1.bf16.msra.mxu0 0
        %293 = vmatprep.subr.bf16.mxu0 0
        %294 = vmatpush1.bf16.msra.mxu0 0
        %295 = vmatprep.subr.bf16.mxu0 0
        %296 = vmatpush1.bf16.msra.mxu0 0
        %297 = vmatprep.subr.bf16.mxu0 0
        %298 = vmatpush1.bf16.msra.mxu0 0
        %299 = vmatprep.subr.bf16.mxu0 0
        %300 = vmatpush1.bf16.msra.mxu0 0
        %301 = vmatprep.subr.bf16.mxu0 0
        %302 = vmatpush1.bf16.msra.mxu0 0
        %303 = vmatprep.subr.bf16.mxu0 0
        %304 = vmatpush1.bf16.msra.mxu0 0
        %305 = vmatprep.subr.bf16.mxu0 0
        %306 = vmatpush1.bf16.msra.mxu0 0
        %307 = vmatprep.subr.bf16.mxu0 0
        %308 = vmatpush1.bf16.msra.mxu0 0
        %309 = vmatprep.subr.bf16.mxu0 0
        %310 = vmatpush1.bf16.msra.mxu0 0
        %311 = vmatprep.subr.bf16.mxu0 0
        %312 = vmatpush1.bf16.msra.mxu0 0
        %313 = vmatprep.subr.bf16.mxu0 0
        %314 = vmatpush1.bf16.msra.mxu0 0
        %315 = vmatprep.subr.bf16.mxu0 0
        %316 = vmatpush1.bf16.msra.mxu0 0
        %317 = vmatprep.subr.bf16.mxu0 0
        %318 = vmatpush1.bf16.msra.mxu0 0
        %319 = vmatprep.mubr.bf16.mxu0 0
        %320 = vmatmul.mubr.bf16.gmra.mrb[0].mxu0 %v285
        %v321 = vpop.f32.mrb[0].mxu0
        %v322 = vadd.f32 %v269, %v321
        %v323 = vpop.f32.mrb[0].mxu0
        %v324 = vpop.f32.mrb[0].mxu0
        %v325 = vpop.f32.mrb[0].mxu0
        %326 = vdwg.mxu0
        %v327 = vmul.f32 %v322, %v322
        %v328 = vmul.f32 %v322, %v327
        %v329 = vmul.f32 %v328, 0.044715
        %v330 = vadd.f32 %v322, %v329
        %v331 = vmul.f32 %v330, 0.7978846
        %v332 = vtanh.pop %v331
        %v333 = vadd.f32 %v332, 1.0
        %v334 = vmul.f32 %v333, 0.5
        %v335 = vmul.f32 %v322, %v334
        %v336 = vld [vmem:[%s3] sm:$0x1]
        %v338 = vlaneseq
        %v339 = vshrl.u32 %v338, 7
        %v340 = vsub.s32 0, %v339
        %v341 = vrot.slane %v336, %v340
        %v343 = vmul.f32 %v335, %v341
        %344 = vadd.xlane.f32.xlu0 %v343
        %v345 = vpop.xlane.xlu0 %344
        %v346 = vld [vmem:[#allocation2] sm:$0x1]
        %v348 = vlaneseq
        %v349 = vshrl.u32 %v348, 7
        %v350 = vsub.s32 0, %v349
        %v351 = vrot.slane %v346, %v350
        %v353 = vadd.f32 %v345, %v351
        %v354 = vxor.u32 %v353, 2147483648
        %v355 = vmul.f32 %v354, 1.442695
        %v356 = vpow.pop %v355
        %v357 = vadd.f32 %v356, 1.0
        %v358 = vrcp.pop %v357
        %v359 = vmul.f32 1.0, %v358
        %vm360 = vcmask 7168
        %361 = vst.msk [vmem:[%s256] sm:$0xff] %vm360, %v359
        %p362 = scmp.lt.s32.totalorder %s22, 1
        %s363 = scalar_select %p362, %s22, 1
        %s364 = smul.addr %s363, 8
        %s365 = scalar_lea.vmem %s5, %s364
        // Predicated region
        $region49: #{tpu_custom_call.1} parent=39 // pred_check
          %p366 = pneg %p150
        $region50: #{tpu_custom_call.1} parent=39 // pred_check_branch
          %368 = sbr.rel (%p366) target = $region52
        $region51: #{tpu_custom_call.1} parent=39 // pred_region
          _
        $region52: #{tpu_custom_call.1} parent=39 // pred_fallthru
          _
      $region40: #{tpu_custom_call.1} parent=5 // pred_fallthru
        _
      %p369 = scmp.le.s32.totalorder 2, %s17
      // Predicated region
      $region53: #{tpu_custom_call.1} parent=5 // pred_check
        %p370 = pneg %p369
      $region54: #{tpu_custom_call.1} parent=5 // pred_check_branch
        %372 = sbr.rel (%p370) target = $region56
      $region55: #{tpu_custom_call.1} parent=5 // pred_region
        %s373 = ssub.s32 %s17, 2
        // Predicated region
        $region57: #{tpu_custom_call.1} parent=55 // pred_check
          %p374 = pneg %p156
        $region58: #{tpu_custom_call.1} parent=55 // pred_check_branch
          %376 = sbr.rel (%p374) target = $region60
        $region59: #{tpu_custom_call.1} parent=55 // pred_region
          %p377 = scmp.lt.s32.totalorder %s23, 1
          %s378 = scalar_select %p377, %s23, 1
          %s379 = smul.addr %s378, 8
          %s380 = scalar_lea.vmem %s5, %s379
        $region60: #{tpu_custom_call.1} parent=55 // pred_fallthru
          _
      $region56: #{tpu_custom_call.1} parent=5 // pred_fallthru
        _
    $region6: #{tpu_custom_call.1} parent=1 // loop_footer
      %s21 = sadd.s32 1, %s17
    $region7: #{tpu_custom_call.1} parent=1 // loop_footer_branch
      %16 = sbr.rel target = $region3
    $region8: #{tpu_custom_call.1} parent=1 // loop_exit
      _
    %381 = vsyncpa [#allocation4], 1
    %s382 = scalar_lea.sflag [#allocation4], 1
    %383 = vsyncpa %s382, 1
    %384 = vsyncpa [#allocation6], 1

</llo_original>
